<compile_context>
chip_gen: v7x
topology: tpu7x:2x2x1
jax: 0.10.0
libtpu: 0.0.40
codegen_flags: <defaults>
</compile_context>

<pallas_src>
import jax
import jax.numpy as jnp
from jax.experimental import pallas as pl
from jax.experimental.pallas import tpu as pltpu


def _mlp_kernel(x_ref, w1_ref, b1_ref, w2_ref, b2_ref, w3_ref, b3_ref,
                w4f_ref, b4f_ref, out_ref):
    """Entire StrongStandardNet forward for one batch, fully fused in VMEM."""
    x = x_ref[...]                                              # (B, F)

    h = jnp.dot(x, w1_ref[...], preferred_element_type=jnp.float32)
    h = jnp.maximum(h + b1_ref[...], 0.0)                       # (B, 512)

    h = jnp.dot(h, w2_ref[...], preferred_element_type=jnp.float32)
    h = jnp.maximum(h + b2_ref[...], 0.0)                       # (B, 128)

    h = jnp.dot(h, w3_ref[...], preferred_element_type=jnp.float32)
    h = jnp.maximum(h + b3_ref[...], 0.0)                       # (B, 128)

    # Fused output heads: [linear4 | linear4_2] -> (B, 2*O)
    out = jnp.dot(h, w4f_ref[...], preferred_element_type=jnp.float32)
    out_ref[...] = out + b4f_ref[...]


def strong_standard_net_forward(x, params):
    """x: (B, F) float32.  params: dict of (in, out) weights and (1, out) biases.

    Returns (y_avg, rho), each (B, O), matching StrongStandardNet.forward.
    """
    w1, b1 = params["w1"], params["b1"]
    w2, b2 = params["w2"], params["b2"]
    w3, b3 = params["w3"], params["b3"]
    w4, b4 = params["w4"], params["b4"]
    w42, b42 = params["w42"], params["b42"]

    B, F = x.shape
    O = w4.shape[1]

    # Host-side fusion of the two output heads along the output axis.
    w4f = jnp.concatenate([w4, w42], axis=1)                    # (128, 2*O)
    b4f = jnp.concatenate([b4, b42], axis=1)                    # (1, 2*O)

    def full_spec(a):
        # Full-array block, constant index_map — resident in VMEM, one DMA.
        return pl.BlockSpec(a.shape, lambda i: (0,) * a.ndim)

    operands = (x, w1, b1, w2, b2, w3, b3, w4f, b4f)

    out = pl.pallas_call(
        _mlp_kernel,
        out_shape=jax.ShapeDtypeStruct((B, 2 * O), jnp.float32),
        grid_spec=pltpu.PrefetchScalarGridSpec(
            num_scalar_prefetch=0,
            grid=(1,),
            in_specs=[full_spec(a) for a in operands],
            out_specs=full_spec(jnp.zeros((B, 2 * O), jnp.float32)),
        ),
        compiler_params=pltpu.CompilerParams(
            dimension_semantics=("arbitrary",)),
    )(*operands)

    y_avg = out[:, :O]
    rho = out[:, O:]
    return y_avg, rho


def init_linear(key, in_size, out_size):
    """Mirror nn.Linear default init; store weight transposed as (in, out)."""
    k_w, k_b = jax.random.split(key)
    bound = 1.0 / jnp.sqrt(jnp.float32(in_size))
    w = jax.random.uniform(k_w, (in_size, out_size),
                           minval=-bound, maxval=bound, dtype=jnp.float32)
    b = jax.random.uniform(k_b, (1, out_size),
                           minval=-bound, maxval=bound, dtype=jnp.float32)
    return w, b


if __name__ == "__main__":
    # Small shapes consistent with the module (hl_sizes fixed at [512, 128]).
    batch = 8
    input_size = 16
    output_size = 4
    hl_sizes = [512, 128]

    key = jax.random.PRNGKey(0)
    kx, k1, k2, k3, k4, k5 = jax.random.split(key, 6)

    x = jax.random.normal(kx, (batch, input_size), dtype=jnp.float32)

    w1, b1 = init_linear(k1, input_size, hl_sizes[0])
    w2, b2 = init_linear(k2, hl_sizes[0], hl_sizes[1])
    w3, b3 = init_linear(k3, hl_sizes[1], hl_sizes[1])
    w4, b4 = init_linear(k4, hl_sizes[1], output_size)
    w42, b42 = init_linear(k5, hl_sizes[1], output_size)

    params = dict(w1=w1, b1=b1, w2=w2, b2=b2, w3=w3, b3=b3,
                  w4=w4, b4=b4, w42=w42, b42=b42)

    y_avg, rho = strong_standard_net_forward(x, params)
    jax.block_until_ready((y_avg, rho))

    # Pure-JAX reference for sanity check.
    def ref_forward(x, p):
        h = jnp.maximum(x @ p["w1"] + p["b1"], 0.0)
        h = jnp.maximum(h @ p["w2"] + p["b2"], 0.0)
        h = jnp.maximum(h @ p["w3"] + p["b3"], 0.0)
        return h @ p["w4"] + p["b4"], h @ p["w42"] + p["b42"]

    y_ref, r_ref = ref_forward(x, params)
    assert y_avg.shape == (batch, output_size)
    assert rho.shape == (batch, output_size)
    assert jnp.allclose(y_avg, y_ref, atol=1e-4, rtol=1e-4)
    assert jnp.allclose(rho, r_ref, atol=1e-4, rtol=1e-4)

    # TODO(synk): forward_dist's torch.normal aleatoric sampling is host-side
    # glue (not part of forward()) and is left to plain JAX if needed.

    print("KERNEL_OK")
</pallas_src>

<mosaic_0001>
module attributes {stable_mosaic.version = 11 : i64} {
  func.func @_mlp_kernel(%arg0: i32, %arg1: memref<8x16xf32, #tpu.memory_space<vmem>>, %arg2: memref<16x512xf32, #tpu.memory_space<vmem>>, %arg3: memref<1x512xf32, #tpu.memory_space<vmem>>, %arg4: memref<512x128xf32, #tpu.memory_space<vmem>>, %arg5: memref<1x128xf32, #tpu.memory_space<vmem>>, %arg6: memref<128x128xf32, #tpu.memory_space<vmem>>, %arg7: memref<1x128xf32, #tpu.memory_space<vmem>>, %arg8: memref<128x8xf32, #tpu.memory_space<vmem>>, %arg9: memref<1x8xf32, #tpu.memory_space<vmem>>, %arg10: memref<8x8xf32, #tpu.memory_space<vmem>>) attributes {dimension_semantics = [#tpu.dimension_semantics<arbitrary>], iteration_bounds = array<i64: 1>, scalar_prefetch = 0 : i64, scratch_operands = 0 : i64, tpu.core_type = #tpu.core_type<tc>, window_params = [{pipeline_mode = #tpu.pipeline_mode<synchronous>, transform_indices = @transform_0, window_bounds = array<i64: 8, 16>}, {pipeline_mode = #tpu.pipeline_mode<synchronous>, transform_indices = @transform_1, window_bounds = array<i64: 16, 512>}, {pipeline_mode = #tpu.pipeline_mode<synchronous>, transform_indices = @transform_2, window_bounds = array<i64: 1, 512>}, {pipeline_mode = #tpu.pipeline_mode<synchronous>, transform_indices = @transform_3, window_bounds = array<i64: 512, 128>}, {pipeline_mode = #tpu.pipeline_mode<synchronous>, transform_indices = @transform_4, window_bounds = array<i64: 1, 128>}, {pipeline_mode = #tpu.pipeline_mode<synchronous>, transform_indices = @transform_5, window_bounds = array<i64: 128, 128>}, {pipeline_mode = #tpu.pipeline_mode<synchronous>, transform_indices = @transform_6, window_bounds = array<i64: 1, 128>}, {pipeline_mode = #tpu.pipeline_mode<synchronous>, transform_indices = @transform_7, window_bounds = array<i64: 128, 8>}, {pipeline_mode = #tpu.pipeline_mode<synchronous>, transform_indices = @transform_8, window_bounds = array<i64: 1, 8>}, {pipeline_mode = #tpu.pipeline_mode<synchronous>, transform_indices = @transform_9, window_bounds = array<i64: 8, 8>}]} {
    %c0 = arith.constant 0 : index
    %c0_0 = arith.constant 0 : index
    %0 = vector.load %arg1[%c0, %c0_0] : memref<8x16xf32, #tpu.memory_space<vmem>>, vector<8x16xf32>
    %c0_1 = arith.constant 0 : index
    %c0_2 = arith.constant 0 : index
    %1 = vector.load %arg2[%c0_1, %c0_2] : memref<16x512xf32, #tpu.memory_space<vmem>>, vector<16x512xf32>
    %cst = arith.constant dense<0.000000e+00> : vector<8x512xf32>
    %2 = tpu.matmul %0, %1, %cst {dimension_numbers = #tpu.dot_dimension_numbers<[1], [0], [0], [1], [0, 0, 1, 1], [], []>} : vector<8x16xf32>, vector<16x512xf32>, vector<8x512xf32> -> vector<8x512xf32>
    %c0_3 = arith.constant 0 : index
    %c0_4 = arith.constant 0 : index
    %3 = vector.load %arg3[%c0_3, %c0_4] : memref<1x512xf32, #tpu.memory_space<vmem>>, vector<1x512xf32>
    %4 = vector.broadcast %3 : vector<1x512xf32> to vector<8x512xf32>
    %5 = arith.addf %2, %4 : vector<8x512xf32>
    %cst_5 = arith.constant 0.000000e+00 : f32
    %6 = vector.broadcast %cst_5 : f32 to vector<8x512xf32>
    %7 = arith.maximumf %5, %6 : vector<8x512xf32>
    %c0_6 = arith.constant 0 : index
    %c0_7 = arith.constant 0 : index
    %8 = vector.load %arg4[%c0_6, %c0_7] : memref<512x128xf32, #tpu.memory_space<vmem>>, vector<512x128xf32>
    %cst_8 = arith.constant dense<0.000000e+00> : vector<8x128xf32>
    %9 = tpu.matmul %7, %8, %cst_8 {dimension_numbers = #tpu.dot_dimension_numbers<[1], [0], [0], [1], [0, 0, 1, 1], [], []>} : vector<8x512xf32>, vector<512x128xf32>, vector<8x128xf32> -> vector<8x128xf32>
    %c0_9 = arith.constant 0 : index
    %c0_10 = arith.constant 0 : index
    %10 = vector.load %arg5[%c0_9, %c0_10] : memref<1x128xf32, #tpu.memory_space<vmem>>, vector<1x128xf32>
    %11 = vector.broadcast %10 : vector<1x128xf32> to vector<8x128xf32>
    %12 = arith.addf %9, %11 : vector<8x128xf32>
    %cst_11 = arith.constant 0.000000e+00 : f32
    %13 = vector.broadcast %cst_11 : f32 to vector<8x128xf32>
    %14 = arith.maximumf %12, %13 : vector<8x128xf32>
    %c0_12 = arith.constant 0 : index
    %c0_13 = arith.constant 0 : index
    %15 = vector.load %arg6[%c0_12, %c0_13] : memref<128x128xf32, #tpu.memory_space<vmem>>, vector<128x128xf32>
    %cst_14 = arith.constant dense<0.000000e+00> : vector<8x128xf32>
    %16 = tpu.matmul %14, %15, %cst_14 {dimension_numbers = #tpu.dot_dimension_numbers<[1], [0], [0], [1], [0, 0, 1, 1], [], []>} : vector<8x128xf32>, vector<128x128xf32>, vector<8x128xf32> -> vector<8x128xf32>
    %c0_15 = arith.constant 0 : index
    %c0_16 = arith.constant 0 : index
    %17 = vector.load %arg7[%c0_15, %c0_16] : memref<1x128xf32, #tpu.memory_space<vmem>>, vector<1x128xf32>
    %18 = vector.broadcast %17 : vector<1x128xf32> to vector<8x128xf32>
    %19 = arith.addf %16, %18 : vector<8x128xf32>
    %cst_17 = arith.constant 0.000000e+00 : f32
    %20 = vector.broadcast %cst_17 : f32 to vector<8x128xf32>
    %21 = arith.maximumf %19, %20 : vector<8x128xf32>
    %c0_18 = arith.constant 0 : index
    %c0_19 = arith.constant 0 : index
    %22 = vector.load %arg8[%c0_18, %c0_19] : memref<128x8xf32, #tpu.memory_space<vmem>>, vector<128x8xf32>
    %cst_20 = arith.constant dense<0.000000e+00> : vector<8x8xf32>
    %23 = tpu.matmul %21, %22, %cst_20 {dimension_numbers = #tpu.dot_dimension_numbers<[1], [0], [0], [1], [0, 0, 1, 1], [], []>} : vector<8x128xf32>, vector<128x8xf32>, vector<8x8xf32> -> vector<8x8xf32>
    %c0_21 = arith.constant 0 : index
    %c0_22 = arith.constant 0 : index
    %24 = vector.load %arg9[%c0_21, %c0_22] : memref<1x8xf32, #tpu.memory_space<vmem>>, vector<1x8xf32>
    %25 = vector.broadcast %24 : vector<1x8xf32> to vector<8x8xf32>
    %26 = arith.addf %23, %25 : vector<8x8xf32>
    %c0_23 = arith.constant 0 : index
    %c0_24 = arith.constant 0 : index
    %27 = vector.load %arg10[%c0_23, %c0_24] : memref<8x8xf32, #tpu.memory_space<vmem>>, vector<8x8xf32>
    tpu.vector_store %arg10[%c0_23, %c0_24], %26 {strides = array<i32>} : memref<8x8xf32, #tpu.memory_space<vmem>>, vector<8x8xf32>,
    return
  }
  func.func @transform_0(%arg0: i32) -> (i32, i32) {
    %c0_i32 = arith.constant 0 : i32
    %c0_i32_0 = arith.constant 0 : i32
    %c0_i32_1 = arith.constant 0 : i32
    return %c0_i32, %c0_i32_0 : i32, i32
  }
  func.func @transform_1(%arg0: i32) -> (i32, i32) {
    %c0_i32 = arith.constant 0 : i32
    %c0_i32_0 = arith.constant 0 : i32
    %c0_i32_1 = arith.constant 0 : i32
    return %c0_i32, %c0_i32_0 : i32, i32
  }
  func.func @transform_2(%arg0: i32) -> (i32, i32) {
    %c0_i32 = arith.constant 0 : i32
    %c0_i32_0 = arith.constant 0 : i32
    %c0_i32_1 = arith.constant 0 : i32
    return %c0_i32, %c0_i32_0 : i32, i32
  }
  func.func @transform_3(%arg0: i32) -> (i32, i32) {
    %c0_i32 = arith.constant 0 : i32
    %c0_i32_0 = arith.constant 0 : i32
    %c0_i32_1 = arith.constant 0 : i32
    return %c0_i32, %c0_i32_0 : i32, i32
  }
  func.func @transform_4(%arg0: i32) -> (i32, i32) {
    %c0_i32 = arith.constant 0 : i32
    %c0_i32_0 = arith.constant 0 : i32
    %c0_i32_1 = arith.constant 0 : i32
    return %c0_i32, %c0_i32_0 : i32, i32
  }
  func.func @transform_5(%arg0: i32) -> (i32, i32) {
    %c0_i32 = arith.constant 0 : i32
    %c0_i32_0 = arith.constant 0 : i32
    %c0_i32_1 = arith.constant 0 : i32
    return %c0_i32, %c0_i32_0 : i32, i32
  }
  func.func @transform_6(%arg0: i32) -> (i32, i32) {
    %c0_i32 = arith.constant 0 : i32
    %c0_i32_0 = arith.constant 0 : i32
    %c0_i32_1 = arith.constant 0 : i32
    return %c0_i32, %c0_i32_0 : i32, i32
  }
  func.func @transform_7(%arg0: i32) -> (i32, i32) {
    %c0_i32 = arith.constant 0 : i32
    %c0_i32_0 = arith.constant 0 : i32
    %c0_i32_1 = arith.constant 0 : i32
    return %c0_i32, %c0_i32_0 : i32, i32
  }
  func.func @transform_8(%arg0: i32) -> (i32, i32) {
    %c0_i32 = arith.constant 0 : i32
    %c0_i32_0 = arith.constant 0 : i32
    %c0_i32_1 = arith.constant 0 : i32
    return %c0_i32, %c0_i32_0 : i32, i32
  }
  func.func @transform_9(%arg0: i32) -> (i32, i32) {
    %c0_i32 = arith.constant 0 : i32
    %c0_i32_0 = arith.constant 0 : i32
    %c0_i32_1 = arith.constant 0 : i32
    return %c0_i32, %c0_i32_0 : i32, i32
  }
}

</mosaic_0001>

<llo_original>
// kernel: tpu_custom_call.1
$region0: #{tpu_custom_call.1}
  #allocation0 [shape = 'u32[]', space=smem, size = 0x4, offset = 0x4, fixed_abs, tag = 'smem constant byte address 0x4 - core index']
  #allocation1 [shape = 'u32[144,128]{1,0:T(1,128)}', space=vmem, size = 0x12000, scoped, tag = 'internal scratch']
  %s0 = inlined_call_operand.vmem [shape: f32[8,16], index: 0, kind: input, shape index: {}]
  %s1 = inlined_call_operand.hbm [shape: f32[16,512], index: 1, kind: input, shape index: {}]
  %s2 = inlined_call_operand.vmem [shape: f32[1,512], index: 2, kind: input, shape index: {}]
  %s3 = inlined_call_operand.hbm [shape: f32[512,128], index: 3, kind: input, shape index: {}]
  %s4 = inlined_call_operand.vmem [shape: f32[1,128], index: 4, kind: input, shape index: {}]
  %s5 = inlined_call_operand.vmem [shape: f32[128,128], index: 5, kind: input, shape index: {}]
  %s6 = inlined_call_operand.vmem [shape: f32[1,128], index: 6, kind: input, shape index: {}]
  %s7 = inlined_call_operand.vmem [shape: f32[128,8], index: 7, kind: input, shape index: {}]
  %s8 = inlined_call_operand.vmem [shape: f32[1,8], index: 8, kind: input, shape index: {}]
  %s9 = inlined_call_operand.hbm [shape: f32[8,8], index: 9, kind: output, shape index: {}]
  %s10 = sld [smem:[#allocation0]]
  $region54: #{tpu_custom_call.1} parent=0
    _
  %s12 = ssub.s32 1, %s10
  %s13 = scalar_select 0, %s12, %s10
  $region1: #{tpu_custom_call.1} parent=0
    #allocation2 [shape = 'u8[32768]{0}', space=vmem, size = 0x8000, scoped, tag = 'input window, operand 1, single buffered']
    #allocation3 [shape = 's32[1]{0}', space=sflag, size = 0x4, scoped, tag = 'scoped memory for tpu_custom_call.1']
    #allocation4 [shape = 's32[1]{0}', space=sflag, size = 0x4, scoped, tag = 'scoped memory for tpu_custom_call.1']
    #allocation5 [shape = 'u8[262144]{0}', space=vmem, size = 0x40000, scoped, tag = 'input window, operand 3, single buffered']
    #allocation6 [shape = 's32[1]{0}', space=sflag, size = 0x4, scoped, tag = 'scoped memory for tpu_custom_call.1']
    #allocation7 [shape = 'u8[4096]{0}', space=vmem, size = 0x1000, scoped, tag = 'output window, operand 0, single buffered']
    %14 = vsyncpa [#allocation3], 0
    %15 = vsyncpa [#allocation6], 0
    %16 = vsyncpa [#allocation4], 0
    // Predicated region
    $region2: #{tpu_custom_call.1} parent=1 // pred_check
      _
    $region3: #{tpu_custom_call.1} parent=1 // pred_check_branch
      %18 = sbr.rel (0) target = $region5
    $region4: #{tpu_custom_call.1} parent=1 // pred_region
      _
    $region5: #{tpu_custom_call.1} parent=1 // pred_fallthru
      _
    // Predicated region
    $region6: #{tpu_custom_call.1} parent=1 // pred_check
      _
    $region7: #{tpu_custom_call.1} parent=1 // pred_check_branch
      %20 = sbr.rel (0) target = $region9
    $region8: #{tpu_custom_call.1} parent=1 // pred_region
      %s22 = ssub.s32 1024, 1024
      %23 = vsyncadd [#allocation3], %s22
      %s24 = sshll.u32 [#allocation2], 4
      %s25 = int_to_ptr.vmem [resolvable:$true] %s24
      %30 = dma.hbm_to_vmem [thread:$0]  %s1, 1024, %s25, [#allocation3], 512, 512, 32
    $region9: #{tpu_custom_call.1} parent=1 // pred_fallthru
      _
    // Predicated region
    $region10: #{tpu_custom_call.1} parent=1 // pred_check
      _
    $region11: #{tpu_custom_call.1} parent=1 // pred_check_branch
      %32 = sbr.rel (0) target = $region13
    $region12: #{tpu_custom_call.1} parent=1 // pred_region
      _
    $region13: #{tpu_custom_call.1} parent=1 // pred_fallthru
      _
    // Predicated region
    $region14: #{tpu_custom_call.1} parent=1 // pred_check
      _
    $region15: #{tpu_custom_call.1} parent=1 // pred_check_branch
      %34 = sbr.rel (0) target = $region17
    $region16: #{tpu_custom_call.1} parent=1 // pred_region
      %s36 = ssub.s32 8192, 8192
      %37 = vsyncadd [#allocation6], %s36
      %s38 = sshll.u32 [#allocation5], 4
      %s39 = int_to_ptr.vmem [resolvable:$true] %s38
      %44 = dma.hbm_to_vmem [thread:$0]  %s3, 8192, %s39, [#allocation6], 128, 128, 8
    $region17: #{tpu_custom_call.1} parent=1 // pred_fallthru
      _
    // Predicated region
    $region18: #{tpu_custom_call.1} parent=1 // pred_check
      _
    $region19: #{tpu_custom_call.1} parent=1 // pred_check_branch
      %46 = sbr.rel (0) target = $region21
    $region20: #{tpu_custom_call.1} parent=1 // pred_region
      _
    $region21: #{tpu_custom_call.1} parent=1 // pred_fallthru
      _
    // Predicated region
    $region22: #{tpu_custom_call.1} parent=1 // pred_check
      _
    $region23: #{tpu_custom_call.1} parent=1 // pred_check_branch
      %48 = sbr.rel (0) target = $region25
    $region24: #{tpu_custom_call.1} parent=1 // pred_region
      _
    $region25: #{tpu_custom_call.1} parent=1 // pred_fallthru
      _
    // Predicated region
    $region26: #{tpu_custom_call.1} parent=1 // pred_check
      _
    $region27: #{tpu_custom_call.1} parent=1 // pred_check_branch
      %50 = sbr.rel (0) target = $region29
    $region28: #{tpu_custom_call.1} parent=1 // pred_region
      _
    $region29: #{tpu_custom_call.1} parent=1 // pred_fallthru
      _
    // Predicated region
    $region30: #{tpu_custom_call.1} parent=1 // pred_check
      _
    $region31: #{tpu_custom_call.1} parent=1 // pred_check_branch
      %52 = sbr.rel (0) target = $region33
    $region32: #{tpu_custom_call.1} parent=1 // pred_region
      _
    $region33: #{tpu_custom_call.1} parent=1 // pred_fallthru
      _
    // Predicated region
    $region34: #{tpu_custom_call.1} parent=1 // pred_check
      _
    $region35: #{tpu_custom_call.1} parent=1 // pred_check_branch
      %54 = sbr.rel (0) target = $region37
    $region36: #{tpu_custom_call.1} parent=1 // pred_region
      _
    $region37: #{tpu_custom_call.1} parent=1 // pred_fallthru
      _
    // Predicated region
    $region38: #{tpu_custom_call.1} parent=1 // pred_check
      _
    $region39: #{tpu_custom_call.1} parent=1 // pred_check_branch
      %56 = sbr.rel (0) target = $region41
    $region40: #{tpu_custom_call.1} parent=1 // pred_region
      %57 = dma.done [#allocation3], 1024
    $region41: #{tpu_custom_call.1} parent=1 // pred_fallthru
      _
    // Predicated region
    $region42: #{tpu_custom_call.1} parent=1 // pred_check
      _
    $region43: #{tpu_custom_call.1} parent=1 // pred_check_branch
      %59 = sbr.rel (0) target = $region45
    $region44: #{tpu_custom_call.1} parent=1 // pred_region
      %60 = dma.done [#allocation6], 8192
    $region45: #{tpu_custom_call.1} parent=1 // pred_fallthru
      _
    %v61 = vld [vmem:[%s0] sm:$0xff]
    %v62 = vld [vmem:[#allocation2] sm:$0xff]
    %v63 = vld [vmem:[#allocation2 + $0x8] sm:$0xff]
    %v64 = vld [vmem:[#allocation2 + $0x10] sm:$0xff]
    %v65 = vld [vmem:[#allocation2 + $0x18] sm:$0xff]
    %v66 = vld [vmem:[#allocation2 + $0x20] sm:$0xff]
    %v67 = vld [vmem:[#allocation2 + $0x28] sm:$0xff]
    %v68 = vld [vmem:[#allocation2 + $0x30] sm:$0xff]
    %v69 = vld [vmem:[#allocation2 + $0x38] sm:$0xff]
    %v70 = vld [vmem:[%s2] sm:$0xf]
    %v72 = vlaneseq
    %v73 = vshrl.u32 %v72, 7
    %v74 = vsub.s32 0, %v73
    %v75 = vrot.slane %v70, %v74
    %v76 = vlaneseq
    %v77 = vshrl.u32 %v76, 7
    %v78 = vsub.s32 1, %v77
    %v79 = vrot.slane %v70, %v78
    %v80 = vlaneseq
    %v81 = vshrl.u32 %v80, 7
    %v82 = vsub.s32 2, %v81
    %v83 = vrot.slane %v70, %v82
    %v84 = vlaneseq
    %v85 = vshrl.u32 %v84, 7
    %v86 = vsub.s32 3, %v85
    %v87 = vrot.slane %v70, %v86
    %vm92 = vcmask 130048
    %v94 = vsel %vm92, %v61, 0
    %96 = vmatprep.subr.mxu0 %v63
    %97 = vmatpush1.msra.mxu0 %v62
    %98 = vmatprep.subr.mxu0 %v67
    %99 = vmatpush1.msra.mxu0 %v66
    %100 = vmatprep.subr.mxu0 0.0
    %101 = vmatpush1.msra.mxu0 0.0
    %102 = vmatprep.subr.mxu0 0.0
    %103 = vmatpush1.msra.mxu0 0.0
    %104 = vmatprep.subr.mxu0 0.0
    %105 = vmatpush1.msra.mxu0 0.0
    %106 = vmatprep.subr.mxu0 0.0
    %107 = vmatpush1.msra.mxu0 0.0
    %108 = vmatprep.subr.mxu0 0.0
    %109 = vmatpush1.msra.mxu0 0.0
    %110 = vmatprep.subr.mxu0 0.0
    %111 = vmatpush1.msra.mxu0 0.0
    %112 = vmatprep.subr.mxu0 0.0
    %113 = vmatpush1.msra.mxu0 0.0
    %114 = vmatprep.subr.mxu0 0.0
    %115 = vmatpush1.msra.mxu0 0.0
    %116 = vmatprep.subr.mxu0 0.0
    %117 = vmatpush1.msra.mxu0 0.0
    %118 = vmatprep.subr.mxu0 0.0
    %119 = vmatpush1.msra.mxu0 0.0
    %120 = vmatprep.subr.mxu0 0.0
    %121 = vmatpush1.msra.mxu0 0.0
    %122 = vmatprep.subr.mxu0 0.0
    %123 = vmatpush1.msra.mxu0 0.0
    %124 = vmatprep.subr.mxu0 0.0
    %125 = vmatpush1.msra.mxu0 0.0
    %126 = vmatprep.subr.mxu0 0.0
    %127 = vmatpush1.msra.mxu0 0.0
    %128 = vmatprep.subr.mxu0 0.0
    %129 = vmatpush1.msra.mxu0 0.0
    %130 = vmatprep.subr.mxu0 0.0
    %131 = vmatpush1.msra.mxu0 0.0
    %132 = vmatprep.subr.mxu0 0.0
    %133 = vmatpush1.msra.mxu0 0.0
    %134 = vmatprep.subr.mxu0 0.0
    %135 = vmatpush1.msra.mxu0 0.0
    %136 = vmatprep.subr.mxu0 0.0
    %137 = vmatpush1.msra.mxu0 0.0
    %138 = vmatprep.subr.mxu0 0.0
    %139 = vmatpush1.msra.mxu0 0.0
    %140 = vmatprep.subr.mxu0 0.0
    %141 = vmatpush1.msra.mxu0 0.0
    %142 = vmatprep.subr.mxu0 0.0
    %143 = vmatpush1.msra.mxu0 0.0
    %144 = vmatprep.subr.mxu0 0.0
    %145 = vmatpush1.msra.mxu0 0.0
    %146 = vmatprep.subr.mxu0 0.0
    %147 = vmatpush1.msra.mxu0 0.0
    %148 = vmatprep.subr.mxu0 0.0
    %149 = vmatpush1.msra.mxu0 0.0
    %150 = vmatprep.subr.mxu0 0.0
    %151 = vmatpush1.msra.mxu0 0.0
    %152 = vmatprep.subr.mxu0 0.0
    %153 = vmatpush1.msra.mxu0 0.0
    %154 = vmatprep.subr.mxu0 0.0
    %155 = vmatpush1.msra.mxu0 0.0
    %156 = vmatprep.subr.mxu0 0.0
    %157 = vmatpush1.msra.mxu0 0.0
    %158 = vmatprep.subr.mxu0 0.0
    %159 = vmatpush1.msra.mxu0 0.0
    %160 = vmatprep.mubr.f32.mxu0 0.0
    %161 = vmatmul.mubr.f32.gmra.mrb[0].mxu0 %v94
    %v162 = vpop.f32.mrb[0].mxu0
    %v163 = vadd.f32 %v75, %v162
    %v164 = vpop.f32.mrb[0].mxu0
    %v165 = vadd.f32 %v79, %v164
    %166 = vdwg.mxu0
    %167 = vmatprep.subr.mxu0 %v65
    %168 = vmatpush1.msra.mxu0 %v64
    %169 = vmatprep.subr.mxu0 %v69
    %170 = vmatpush1.msra.mxu0 %v68
    %171 = vmatprep.subr.mxu0 0.0
    %172 = vmatpush1.msra.mxu0 0.0
    %173 = vmatprep.subr.mxu0 0.0
    %174 = vmatpush1.msra.mxu0 0.0
    %175 = vmatprep.subr.mxu0 0.0
    %176 = vmatpush1.msra.mxu0 0.0
    %177 = vmatprep.subr.mxu0 0.0
    %178 = vmatpush1.msra.mxu0 0.0
    %179 = vmatprep.subr.mxu0 0.0
    %180 = vmatpush1.msra.mxu0 0.0
    %181 = vmatprep.subr.mxu0 0.0
    %182 = vmatpush1.msra.mxu0 0.0
    %183 = vmatprep.subr.mxu0 0.0
    %184 = vmatpush1.msra.mxu0 0.0
    %185 = vmatprep.subr.mxu0 0.0
    %186 = vmatpush1.msra.mxu0 0.0
    %187 = vmatprep.subr.mxu0 0.0
    %188 = vmatpush1.msra.mxu0 0.0
    %189 = vmatprep.subr.mxu0 0.0
    %190 = vmatpush1.msra.mxu0 0.0
    %191 = vmatprep.subr.mxu0 0.0
    %192 = vmatpush1.msra.mxu0 0.0
    %193 = vmatprep.subr.mxu0 0.0
    %194 = vmatpush1.msra.mxu0 0.0
    %195 = vmatprep.subr.mxu0 0.0
    %196 = vmatpush1.msra.mxu0 0.0
    %197 = vmatprep.subr.mxu0 0.0
    %198 = vmatpush1.msra.mxu0 0.0
    %199 = vmatprep.subr.mxu0 0.0
    %200 = vmatpush1.msra.mxu0 0.0
    %201 = vmatprep.subr.mxu0 0.0
    %202 = vmatpush1.msra.mxu0 0.0
    %203 = vmatprep.subr.mxu0 0.0
    %204 = vmatpush1.msra.mxu0 0.0
    %205 = vmatprep.subr.mxu0 0.0
    %206 = vmatpush1.msra.mxu0 0.0
    %207 = vmatprep.subr.mxu0 0.0
    %208 = vmatpush1.msra.mxu0 0.0
    %209 = vmatprep.subr.mxu0 0.0
    %210 = vmatpush1.msra.mxu0 0.0
    %211 = vmatprep.subr.mxu0 0.0
    %212 = vmatpush1.msra.mxu0 0.0
    %213 = vmatprep.subr.mxu0 0.0
    %214 = vmatpush1.msra.mxu0 0.0
    %215 = vmatprep.subr.mxu0 0.0
    %216 = vmatpush1.msra.mxu0 0.0
    %217 = vmatprep.subr.mxu0 0.0
    %218 = vmatpush1.msra.mxu0 0.0
    %219 = vmatprep.subr.mxu0 0.0
    %220 = vmatpush1.msra.mxu0 0.0
    %221 = vmatprep.subr.mxu0 0.0
    %222 = vmatpush1.msra.mxu0 0.0
    %223 = vmatprep.subr.mxu0 0.0
    %224 = vmatpush1.msra.mxu0 0.0
    %225 = vmatprep.subr.mxu0 0.0
    %226 = vmatpush1.msra.mxu0 0.0
    %227 = vmatprep.subr.mxu0 0.0
    %228 = vmatpush1.msra.mxu0 0.0
    %229 = vmatprep.subr.mxu0 0.0
    %230 = vmatpush1.msra.mxu0 0.0
    %231 = vmatprep.mubr.f32.mxu0 0.0
    %232 = vmatmul.mubr.f32.gmra.mrb[0].mxu0 %v94
    %v233 = vpop.f32.mrb[0].mxu0
    %v234 = vadd.f32 %v83, %v233
    %v235 = vpop.f32.mrb[0].mxu0
    %v236 = vadd.f32 %v87, %v235
    %237 = vdwg.mxu0
    %v238 = vmax.f32 %v163, 0.0
    %v239 = vmax.f32 %v165, 0.0
    %v240 = vmax.f32 %v234, 0.0
    %v241 = vmax.f32 %v236, 0.0
    %v242 = vld [vmem:[#allocation5] sm:$0xff]
    %v243 = vld [vmem:[#allocation5 + $0x8] sm:$0xff]
    %v244 = vld [vmem:[#allocation5 + $0x10] sm:$0xff]
    %v245 = vld [vmem:[#allocation5 + $0x18] sm:$0xff]
    %v246 = vld [vmem:[#allocation5 + $0x20] sm:$0xff]
    %v247 = vld [vmem:[#allocation5 + $0x28] sm:$0xff]
    %v248 = vld [vmem:[#allocation5 + $0x30] sm:$0xff]
    %v249 = vld [vmem:[#allocation5 + $0x38] sm:$0xff]
    %v250 = vld [vmem:[#allocation5 + $0x40] sm:$0xff]
    %v251 = vld [vmem:[#allocation5 + $0x48] sm:$0xff]
    %v252 = vld [vmem:[#allocation5 + $0x50] sm:$0xff]
    %v253 = vld [vmem:[#allocation5 + $0x58] sm:$0xff]
    %v254 = vld [vmem:[#allocation5 + $0x60] sm:$0xff]
    %v255 = vld [vmem:[#allocation5 + $0x68] sm:$0xff]
    %v256 = vld [vmem:[#allocation5 + $0x70] sm:$0xff]
    %v257 = vld [vmem:[#allocation5 + $0x78] sm:$0xff]
    %v258 = vld [vmem:[#allocation5 + $0x80] sm:$0xff]
    %v259 = vld [vmem:[#allocation5 + $0x88] sm:$0xff]
    %v260 = vld [vmem:[#allocation5 + $0x90] sm:$0xff]
    %v261 = vld [vmem:[#allocation5 + $0x98] sm:$0xff]
    %v262 = vld [vmem:[#allocation5 + $0xa0] sm:$0xff]
    %v263 = vld [vmem:[#allocation5 + $0xa8] sm:$0xff]
    %v264 = vld [vmem:[#allocation5 + $0xb0] sm:$0xff]
    %v265 = vld [vmem:[#allocation5 + $0xb8] sm:$0xff]
    %v266 = vld [vmem:[#allocation5 + $0xc0] sm:$0xff]
    %v267 = vld [vmem:[#allocation5 + $0xc8] sm:$0xff]
    %v268 = vld [vmem:[#allocation5 + $0xd0] sm:$0xff]
    %v269 = vld [vmem:[#allocation5 + $0xd8] sm:$0xff]
    %v270 = vld [vmem:[#allocation5 + $0xe0] sm:$0xff]
    %v271 = vld [vmem:[#allocation5 + $0xe8] sm:$0xff]
    %v272 = vld [vmem:[#allocation5 + $0xf0] sm:$0xff]
    %v273 = vld [vmem:[#allocation5 + $0xf8] sm:$0xff]
    %v274 = vld [vmem:[#allocation5 + $0x100] sm:$0xff]
    %v275 = vld [vmem:[#allocation5 + $0x108] sm:$0xff]
    %v276 = vld [vmem:[#allocation5 + $0x110] sm:$0xff]
    %v277 = vld [vmem:[#allocation5 + $0x118] sm:$0xff]
    %v278 = vld [vmem:[#allocation5 + $0x120] sm:$0xff]
    %v279 = vld [vmem:[#allocation5 + $0x128] sm:$0xff]
    %v280 = vld [vmem:[#allocation5 + $0x130] sm:$0xff]
    %v281 = vld [vmem:[#allocation5 + $0x138] sm:$0xff]
    %v282 = vld [vmem:[#allocation5 + $0x140] sm:$0xff]
    %v283 = vld [vmem:[#allocation5 + $0x148] sm:$0xff]
    %v284 = vld [vmem:[#allocation5 + $0x150] sm:$0xff]
    %v285 = vld [vmem:[#allocation5 + $0x158] sm:$0xff]
    %v286 = vld [vmem:[#allocation5 + $0x160] sm:$0xff]
    %v287 = vld [vmem:[#allocation5 + $0x168] sm:$0xff]
    %v288 = vld [vmem:[#allocation5 + $0x170] sm:$0xff]
    %v289 = vld [vmem:[#allocation5 + $0x178] sm:$0xff]
    %v290 = vld [vmem:[#allocation5 + $0x180] sm:$0xff]
    %v291 = vld [vmem:[#allocation5 + $0x188] sm:$0xff]
    %v292 = vld [vmem:[#allocation5 + $0x190] sm:$0xff]
    %v293 = vld [vmem:[#allocation5 + $0x198] sm:$0xff]
    %v294 = vld [vmem:[#allocation5 + $0x1a0] sm:$0xff]
    %v295 = vld [vmem:[#allocation5 + $0x1a8] sm:$0xff]
    %v296 = vld [vmem:[#allocation5 + $0x1b0] sm:$0xff]
    %v297 = vld [vmem:[#allocation5 + $0x1b8] sm:$0xff]
    %v298 = vld [vmem:[#allocation5 + $0x1c0] sm:$0xff]
    %v299 = vld [vmem:[#allocation5 + $0x1c8] sm:$0xff]
    %v300 = vld [vmem:[#allocation5 + $0x1d0] sm:$0xff]
    %v301 = vld [vmem:[#allocation5 + $0x1d8] sm:$0xff]
    %v302 = vld [vmem:[#allocation5 + $0x1e0] sm:$0xff]
    %v303 = vld [vmem:[#allocation5 + $0x1e8] sm:$0xff]
    %v304 = vld [vmem:[#allocation5 + $0x1f0] sm:$0xff]
    %v305 = vld [vmem:[#allocation5 + $0x1f8] sm:$0xff]
    %v306 = vld [vmem:[%s4] sm:$0x1]
    %v308 = vlaneseq
    %v309 = vshrl.u32 %v308, 7
    %v310 = vsub.s32 0, %v309
    %v311 = vrot.slane %v306, %v310
    %313 = vmatprep.subr.mxu0 0.0
    %314 = vmatpush1.msra.mxu0 %v242
    %315 = vmatprep.subr.mxu0 0.0
    %316 = vmatpush1.msra.mxu0 %v243
    %317 = vmatprep.subr.mxu0 0.0
    %318 = vmatpush1.msra.mxu0 %v244
    %319 = vmatprep.subr.mxu0 0.0
    %320 = vmatpush1.msra.mxu0 %v245
    %321 = vmatprep.subr.mxu0 0.0
    %322 = vmatpush1.msra.mxu0 %v246
    %323 = vmatprep.subr.mxu0 0.0
    %324 = vmatpush1.msra.mxu0 %v247
    %325 = vmatprep.subr.mxu0 0.0
    %326 = vmatpush1.msra.mxu0 %v248
    %327 = vmatprep.subr.mxu0 0.0
    %328 = vmatpush1.msra.mxu0 %v249
    %329 = vmatprep.subr.mxu0 0.0
    %330 = vmatpush1.msra.mxu0 %v250
    %331 = vmatprep.subr.mxu0 0.0
    %332 = vmatpush1.msra.mxu0 %v251
    %333 = vmatprep.subr.mxu0 0.0
    %334 = vmatpush1.msra.mxu0 %v252
    %335 = vmatprep.subr.mxu0 0.0
    %336 = vmatpush1.msra.mxu0 %v253
    %337 = vmatprep.subr.mxu0 0.0
    %338 = vmatpush1.msra.mxu0 %v254
    %339 = vmatprep.subr.mxu0 0.0
    %340 = vmatpush1.msra.mxu0 %v255
    %341 = vmatprep.subr.mxu0 0.0
    %342 = vmatpush1.msra.mxu0 %v256
    %343 = vmatprep.subr.mxu0 0.0
    %344 = vmatpush1.msra.mxu0 %v257
    %345 = vmatprep.subr.mxu0 0.0
    %346 = vmatpush1.msra.mxu0 %v258
    %347 = vmatprep.subr.mxu0 0.0
    %348 = vmatpush1.msra.mxu0 %v259
    %349 = vmatprep.subr.mxu0 0.0
    %350 = vmatpush1.msra.mxu0 %v260
    %351 = vmatprep.subr.mxu0 0.0
    %352 = vmatpush1.msra.mxu0 %v261
    %353 = vmatprep.subr.mxu0 0.0
    %354 = vmatpush1.msra.mxu0 %v262
    %355 = vmatprep.subr.mxu0 0.0
    %356 = vmatpush1.msra.mxu0 %v263
    %357 = vmatprep.subr.mxu0 0.0
    %358 = vmatpush1.msra.mxu0 %v264
    %359 = vmatprep.subr.mxu0 0.0
    %360 = vmatpush1.msra.mxu0 %v265
    %361 = vmatprep.subr.mxu0 0.0
    %362 = vmatpush1.msra.mxu0 %v266
    %363 = vmatprep.subr.mxu0 0.0
    %364 = vmatpush1.msra.mxu0 %v267
    %365 = vmatprep.subr.mxu0 0.0
    %366 = vmatpush1.msra.mxu0 %v268
    %367 = vmatprep.subr.mxu0 0.0
    %368 = vmatpush1.msra.mxu0 %v269
    %369 = vmatprep.subr.mxu0 0.0
    %370 = vmatpush1.msra.mxu0 %v270
    %371 = vmatprep.subr.mxu0 0.0
    %372 = vmatpush1.msra.mxu0 %v271
    %373 = vmatprep.subr.mxu0 0.0
    %374 = vmatpush1.msra.mxu0 %v272
    %375 = vmatprep.subr.mxu0 0.0
    %376 = vmatpush1.msra.mxu0 %v273
    %377 = vmatprep.mubr.f32.mxu0 %v239
    %378 = vmatmul.mubr.f32.gmra.mrb[0].mxu0 %v238
    %v379 = vpop.f32.mrb[0].mxu0
    %v380 = vadd.f32 %v311, %v379
    %v381 = vpop.f32.mrb[0].mxu0
    %382 = vdwg.mxu0
    %383 = vmatprep.subr.mxu0 0.0
    %384 = vmatpush1.msra.mxu0 %v274
    %385 = vmatprep.subr.mxu0 0.0
    %386 = vmatpush1.msra.mxu0 %v275
    %387 = vmatprep.subr.mxu0 0.0
    %388 = vmatpush1.msra.mxu0 %v276
    %389 = vmatprep.subr.mxu0 0.0
    %390 = vmatpush1.msra.mxu0 %v277
    %391 = vmatprep.subr.mxu0 0.0
    %392 = vmatpush1.msra.mxu0 %v278
    %393 = vmatprep.subr.mxu0 0.0
    %394 = vmatpush1.msra.mxu0 %v279
    %395 = vmatprep.subr.mxu0 0.0
    %396 = vmatpush1.msra.mxu0 %v280
    %397 = vmatprep.subr.mxu0 0.0
    %398 = vmatpush1.msra.mxu0 %v281
    %399 = vmatprep.subr.mxu0 0.0
    %400 = vmatpush1.msra.mxu0 %v282
    %401 = vmatprep.subr.mxu0 0.0
    %402 = vmatpush1.msra.mxu0 %v283
    %403 = vmatprep.subr.mxu0 0.0
    %404 = vmatpush1.msra.mxu0 %v284
    %405 = vmatprep.subr.mxu0 0.0
    %406 = vmatpush1.msra.mxu0 %v285
    %407 = vmatprep.subr.mxu0 0.0
    %408 = vmatpush1.msra.mxu0 %v286
    %409 = vmatprep.subr.mxu0 0.0
    %410 = vmatpush1.msra.mxu0 %v287
    %411 = vmatprep.subr.mxu0 0.0
    %412 = vmatpush1.msra.mxu0 %v288
    %413 = vmatprep.subr.mxu0 0.0
    %414 = vmatpush1.msra.mxu0 %v289
    %415 = vmatprep.subr.mxu0 0.0
    %416 = vmatpush1.msra.mxu0 %v290
    %417 = vmatprep.subr.mxu0 0.0
    %418 = vmatpush1.msra.mxu0 %v291
    %419 = vmatprep.subr.mxu0 0.0
    %420 = vmatpush1.msra.mxu0 %v292
    %421 = vmatprep.subr.mxu0 0.0
    %422 = vmatpush1.msra.mxu0 %v293
    %423 = vmatprep.subr.mxu0 0.0
    %424 = vmatpush1.msra.mxu0 %v294
    %425 = vmatprep.subr.mxu0 0.0
    %426 = vmatpush1.msra.mxu0 %v295
    %427 = vmatprep.subr.mxu0 0.0
    %428 = vmatpush1.msra.mxu0 %v296
    %429 = vmatprep.subr.mxu0 0.0
    %430 = vmatpush1.msra.mxu0 %v297
    %431 = vmatprep.subr.mxu0 0.0
    %432 = vmatpush1.msra.mxu0 %v298
    %433 = vmatprep.subr.mxu0 0.0
    %434 = vmatpush1.msra.mxu0 %v299
    %435 = vmatprep.subr.mxu0 0.0
    %436 = vmatpush1.msra.mxu0 %v300
    %437 = vmatprep.subr.mxu0 0.0
    %438 = vmatpush1.msra.mxu0 %v301
    %439 = vmatprep.subr.mxu0 0.0
    %440 = vmatpush1.msra.mxu0 %v302
    %441 = vmatprep.subr.mxu0 0.0
    %442 = vmatpush1.msra.mxu0 %v303
    %443 = vmatprep.subr.mxu0 0.0
    %444 = vmatpush1.msra.mxu0 %v304
    %445 = vmatprep.subr.mxu0 0.0
    %446 = vmatpush1.msra.mxu0 %v305
    %447 = vmatprep.mubr.f32.mxu0 %v241
    %448 = vmatmul.mubr.f32.gmra.mrb[0].mxu0 %v240
    %v449 = vpop.f32.mrb[0].mxu0
    %v450 = vadd.f32 %v380, %v449
    %v451 = vpop.f32.mrb[0].mxu0
    %452 = vdwg.mxu0
    %v453 = vmax.f32 %v450, 0.0
    %v454 = vld [vmem:[%s5] sm:$0xff]
    %v455 = vld [vmem:[%s5 + $0x8] sm:$0xff]
    %v456 = vld [vmem:[%s5 + $0x10] sm:$0xff]
    %v457 = vld [vmem:[%s5 + $0x18] sm:$0xff]
    %v458 = vld [vmem:[%s5 + $0x20] sm:$0xff]
    %v459 = vld [vmem:[%s5 + $0x28] sm:$0xff]
    %v460 = vld [vmem:[%s5 + $0x30] sm:$0xff]
    %v461 = vld [vmem:[%s5 + $0x38] sm:$0xff]
    %v462 = vld [vmem:[%s5 + $0x40] sm:$0xff]
    %v463 = vld [vmem:[%s5 + $0x48] sm:$0xff]
    %v464 = vld [vmem:[%s5 + $0x50] sm:$0xff]
    %v465 = vld [vmem:[%s5 + $0x58] sm:$0xff]
    %v466 = vld [vmem:[%s5 + $0x60] sm:$0xff]
    %v467 = vld [vmem:[%s5 + $0x68] sm:$0xff]
    %v468 = vld [vmem:[%s5 + $0x70] sm:$0xff]
    %v469 = vld [vmem:[%s5 + $0x78] sm:$0xff]
    %v470 = vld [vmem:[%s6] sm:$0x1]
    %v472 = vlaneseq
    %v473 = vshrl.u32 %v472, 7
    %v474 = vsub.s32 0, %v473
    %v475 = vrot.slane %v470, %v474
    %477 = vmatprep.subr.mxu0 0.0
    %478 = vmatpush1.msra.mxu0 %v454
    %479 = vmatprep.subr.mxu0 0.0
    %480 = vmatpush1.msra.mxu0 %v455
    %481 = vmatprep.subr.mxu0 0.0
    %482 = vmatpush1.msra.mxu0 %v456
    %483 = vmatprep.subr.mxu0 0.0
    %484 = vmatpush1.msra.mxu0 %v457
    %485 = vmatprep.subr.mxu0 0.0
    %486 = vmatpush1.msra.mxu0 %v458
    %487 = vmatprep.subr.mxu0 0.0
    %488 = vmatpush1.msra.mxu0 %v459
    %489 = vmatprep.subr.mxu0 0.0
    %490 = vmatpush1.msra.mxu0 %v460
    %491 = vmatprep.subr.mxu0 0.0
    %492 = vmatpush1.msra.mxu0 %v461
    %493 = vmatprep.subr.mxu0 0.0
    %494 = vmatpush1.msra.mxu0 %v462
    %495 = vmatprep.subr.mxu0 0.0
    %496 = vmatpush1.msra.mxu0 %v463
    %497 = vmatprep.subr.mxu0 0.0
    %498 = vmatpush1.msra.mxu0 %v464
    %499 = vmatprep.subr.mxu0 0.0
    %500 = vmatpush1.msra.mxu0 %v465
    %501 = vmatprep.subr.mxu0 0.0
    %502 = vmatpush1.msra.mxu0 %v466
    %503 = vmatprep.subr.mxu0 0.0
    %504 = vmatpush1.msra.mxu0 %v467
    %505 = vmatprep.subr.mxu0 0.0
    %506 = vmatpush1.msra.mxu0 %v468
    %507 = vmatprep.subr.mxu0 0.0
    %508 = vmatpush1.msra.mxu0 %v469
    %509 = vmatprep.subr.mxu0 0.0
    %510 = vmatpush1.msra.mxu0 0.0
    %511 = vmatprep.subr.mxu0 0.0
    %512 = vmatpush1.msra.mxu0 0.0
    %513 = vmatprep.subr.mxu0 0.0
    %514 = vmatpush1.msra.mxu0 0.0
    %515 = vmatprep.subr.mxu0 0.0
    %516 = vmatpush1.msra.mxu0 0.0
    %517 = vmatprep.subr.mxu0 0.0
    %518 = vmatpush1.msra.mxu0 0.0
    %519 = vmatprep.subr.mxu0 0.0
    %520 = vmatpush1.msra.mxu0 0.0
    %521 = vmatprep.subr.mxu0 0.0
    %522 = vmatpush1.msra.mxu0 0.0
    %523 = vmatprep.subr.mxu0 0.0
    %524 = vmatpush1.msra.mxu0 0.0
    %525 = vmatprep.subr.mxu0 0.0
    %526 = vmatpush1.msra.mxu0 0.0
    %527 = vmatprep.subr.mxu0 0.0
    %528 = vmatpush1.msra.mxu0 0.0
    %529 = vmatprep.subr.mxu0 0.0
    %530 = vmatpush1.msra.mxu0 0.0
    %531 = vmatprep.subr.mxu0 0.0
    %532 = vmatpush1.msra.mxu0 0.0
    %533 = vmatprep.subr.mxu0 0.0
    %534 = vmatpush1.msra.mxu0 0.0
    %535 = vmatprep.subr.mxu0 0.0
    %536 = vmatpush1.msra.mxu0 0.0
    %537 = vmatprep.subr.mxu0 0.0
    %538 = vmatpush1.msra.mxu0 0.0
    %539 = vmatprep.subr.mxu0 0.0
    %540 = vmatpush1.msra.mxu0 0.0
    %541 = vmatprep.mubr.f32.mxu0 0.0
    %542 = vmatmul.mubr.f32.gmra.mrb[0].mxu0 %v453
    %v543 = vpop.f32.mrb[0].mxu0
    %v544 = vadd.f32 %v475, %v543
    %v545 = vpop.f32.mrb[0].mxu0
    %546 = vdwg.mxu0
    %v547 = vmax.f32 %v544, 0.0
    %v548 = vld [vmem:[%s7] sm:$0xff]
    %v549 = vld [vmem:[%s7 + $0x8] sm:$0xff]
    %v550 = vld [vmem:[%s7 + $0x10] sm:$0xff]
    %v551 = vld [vmem:[%s7 + $0x18] sm:$0xff]
    %v552 = vld [vmem:[%s7 + $0x20] sm:$0xff]
    %v553 = vld [vmem:[%s7 + $0x28] sm:$0xff]
    %v554 = vld [vmem:[%s7 + $0x30] sm:$0xff]
    %v555 = vld [vmem:[%s7 + $0x38] sm:$0xff]
    %v556 = vld [vmem:[%s7 + $0x40] sm:$0xff]
    %v557 = vld [vmem:[%s7 + $0x48] sm:$0xff]
    %v558 = vld [vmem:[%s7 + $0x50] sm:$0xff]
    %v559 = vld [vmem:[%s7 + $0x58] sm:$0xff]
    %v560 = vld [vmem:[%s7 + $0x60] sm:$0xff]
    %v561 = vld [vmem:[%s7 + $0x68] sm:$0xff]
    %v562 = vld [vmem:[%s7 + $0x70] sm:$0xff]
    %v563 = vld [vmem:[%s7 + $0x78] sm:$0xff]
    %v564 = vld [vmem:[%s8] sm:$0x1]
    %v566 = vlaneseq
    %v567 = vshrl.u32 %v566, 7
    %v568 = vsub.s32 0, %v567
    %v569 = vrot.slane %v564, %v568
    %571 = vmatprep.subr.mxu0 0.0
    %572 = vmatpush1.msra.mxu0 %v548
    %573 = vmatprep.subr.mxu0 0.0
    %574 = vmatpush1.msra.mxu0 %v549
    %575 = vmatprep.subr.mxu0 0.0
    %576 = vmatpush1.msra.mxu0 %v550
    %577 = vmatprep.subr.mxu0 0.0
    %578 = vmatpush1.msra.mxu0 %v551
    %579 = vmatprep.subr.mxu0 0.0
    %580 = vmatpush1.msra.mxu0 %v552
    %581 = vmatprep.subr.mxu0 0.0
    %582 = vmatpush1.msra.mxu0 %v553
    %583 = vmatprep.subr.mxu0 0.0
    %584 = vmatpush1.msra.mxu0 %v554
    %585 = vmatprep.subr.mxu0 0.0
    %586 = vmatpush1.msra.mxu0 %v555
    %587 = vmatprep.subr.mxu0 0.0
    %588 = vmatpush1.msra.mxu0 %v556
    %589 = vmatprep.subr.mxu0 0.0
    %590 = vmatpush1.msra.mxu0 %v557
    %591 = vmatprep.subr.mxu0 0.0
    %592 = vmatpush1.msra.mxu0 %v558
    %593 = vmatprep.subr.mxu0 0.0
    %594 = vmatpush1.msra.mxu0 %v559
    %595 = vmatprep.subr.mxu0 0.0
    %596 = vmatpush1.msra.mxu0 %v560
    %597 = vmatprep.subr.mxu0 0.0
    %598 = vmatpush1.msra.mxu0 %v561
    %599 = vmatprep.subr.mxu0 0.0
    %600 = vmatpush1.msra.mxu0 %v562
    %601 = vmatprep.subr.mxu0 0.0
    %602 = vmatpush1.msra.mxu0 %v563
    %603 = vmatprep.subr.mxu0 0.0
    %604 = vmatpush1.msra.mxu0 0.0
    %605 = vmatprep.subr.mxu0 0.0
    %606 = vmatpush1.msra.mxu0 0.0
    %607 = vmatprep.subr.mxu0 0.0
    %608 = vmatpush1.msra.mxu0 0.0
    %609 = vmatprep.subr.mxu0 0.0
    %610 = vmatpush1.msra.mxu0 0.0
    %611 = vmatprep.subr.mxu0 0.0
    %612 = vmatpush1.msra.mxu0 0.0
    %613 = vmatprep.subr.mxu0 0.0
    %614 = vmatpush1.msra.mxu0 0.0
    %615 = vmatprep.subr.mxu0 0.0
    %616 = vmatpush1.msra.mxu0 0.0
    %617 = vmatprep.subr.mxu0 0.0
    %618 = vmatpush1.msra.mxu0 0.0
    %619 = vmatprep.subr.mxu0 0.0
    %620 = vmatpush1.msra.mxu0 0.0
    %621 = vmatprep.subr.mxu0 0.0
    %622 = vmatpush1.msra.mxu0 0.0
    %623 = vmatprep.subr.mxu0 0.0
    %624 = vmatpush1.msra.mxu0 0.0
    %625 = vmatprep.subr.mxu0 0.0
    %626 = vmatpush1.msra.mxu0 0.0
    %627 = vmatprep.subr.mxu0 0.0
    %628 = vmatpush1.msra.mxu0 0.0
    %629 = vmatprep.subr.mxu0 0.0
    %630 = vmatpush1.msra.mxu0 0.0
    %631 = vmatprep.subr.mxu0 0.0
    %632 = vmatpush1.msra.mxu0 0.0
    %633 = vmatprep.subr.mxu0 0.0
    %634 = vmatpush1.msra.mxu0 0.0
    %635 = vmatprep.mubr.f32.mxu0 0.0
    %636 = vmatmul.mubr.f32.gmra.mrb[0].mxu0 %v547
    %v637 = vpop.f32.mrb[0].mxu0
    %v638 = vadd.f32 %v569, %v637
    %v639 = vpop.f32.mrb[0].mxu0
    %640 = vdwg.mxu0
    %vm641 = vcmask 64512
    %642 = vst.msk [vmem:[#allocation7] sm:$0xff] %vm641, %v638
    // Predicated region
    $region46: #{tpu_custom_call.1} parent=1 // pred_check
      _
    $region47: #{tpu_custom_call.1} parent=1 // pred_check_branch
      %644 = sbr.rel (0) target = $region49
    $region48: #{tpu_custom_call.1} parent=1 // pred_region
      %s646 = ssub.s32 128, 128
      %647 = vsyncadd [#allocation4], %s646
      %s649 = sshll.u32 [#allocation7], 4
      %s650 = int_to_ptr.vmem [resolvable:$true] %s649
      %652 = dma.vmem_to_hbm [thread:$0]  %s650, 128, %s9, [#allocation4]
    $region49: #{tpu_custom_call.1} parent=1 // pred_fallthru
      _
    // Predicated region
    $region50: #{tpu_custom_call.1} parent=1 // pred_check
      _
    $region51: #{tpu_custom_call.1} parent=1 // pred_check_branch
      %654 = sbr.rel (0) target = $region53
    $region52: #{tpu_custom_call.1} parent=1 // pred_region
      %655 = dma.done [#allocation4], 128
    $region53: #{tpu_custom_call.1} parent=1 // pred_fallthru
      _
    %656 = vsyncpa [#allocation3], 1
    %657 = vsyncpa [#allocation6], 1
    %658 = vsyncpa [#allocation4], 1

</llo_original>
